<compile_context>
chip_gen: v5e
topology: v5e:2x2
jax: 0.10.0
libtpu: 0.0.40
codegen_flags: <defaults>
</compile_context>

<pallas_src>
import functools

import jax
import jax.numpy as jnp
from jax.experimental import pallas as pl
from jax.experimental.pallas import tpu as pltpu

LANE = 128      # vreg lane width
SUBLANE = 8     # f32 sublane granule
TB_ALIGN = 256  # MXU-friendly batch-tile granule on v6e/v7x (256x256 MXU)


def _round_up(n: int, m: int) -> int:
    return (n + m - 1) // m * m


def simplenet_kernel(x_ref, w1_ref, b1_ref, w2_ref, w3_ref, w4_ref, b4_ref,
                     o_ref):
    # conv1: Linear(dim_input -> 64, bias) + ReLU  (hidden zero-padded to 128
    # lanes so the intermediate is a full-width vreg slab).
    x = x_ref[...].astype(jnp.bfloat16)
    h = jnp.dot(x, w1_ref[...], preferred_element_type=jnp.float32)
    h = jnp.maximum(h + b1_ref[...], 0.0)

    # conv2: Linear(64 -> 128, no bias) + ReLU
    h = jnp.dot(h.astype(jnp.bfloat16), w2_ref[...],
                preferred_element_type=jnp.float32)
    h = jnp.maximum(h, 0.0)

    # conv3: Linear(128 -> 128, no bias) + ReLU
    h = jnp.dot(h.astype(jnp.bfloat16), w3_ref[...],
                preferred_element_type=jnp.float32)
    h = jnp.maximum(h, 0.0)

    # x.view(-1, 128): no-op for 2-D activations.

    # fc1: Linear(128 -> dim_output, bias) -- computed and stored at the real
    # output width (no padded columns written back to HBM).
    out = jnp.dot(h.astype(jnp.bfloat16), w4_ref[...],
                  preferred_element_type=jnp.float32)
    o_ref[...] = (out + b4_ref[...]).astype(o_ref.dtype)


def _choose_batch_tile(B: int, block_b: int) -> tuple[int, int]:
    """Pick (TB, B_pad): bounded padding waste, >=2 grid steps for larger
    batches (v7x megacore), TB a multiple of 256 when that is cheap."""
    B8 = _round_up(B, SUBLANE)
    if B8 <= 2 * TB_ALIGN:
        return B8, B8                                   # single small tile
    steps = max(2, pl.cdiv(B8, max(block_b, TB_ALIGN)))
    tb = _round_up(pl.cdiv(B8, steps), TB_ALIGN)        # prefer 256-multiple
    if (steps * tb - B8) * 8 > B8:                      # >12.5% padding waste
        tb = _round_up(pl.cdiv(B8, steps), SUBLANE)     # fall back to 8-mult.
    return tb, steps * tb


@functools.partial(jax.jit, static_argnames=("block_b",))
def simplenet_forward(x, prepared_params, *, block_b=4096):
    """Run SimpleNet on x: [B, dim_input] with prepared (bf16, padded) params."""
    w1, b1, w2, w3, w4, b4 = prepared_params
    B, K = x.shape
    H1 = w1.shape[1]            # padded hidden width (128)
    N = w4.shape[1]             # real output width (dim_output)

    TB, B_pad = _choose_batch_tile(B, block_b)
    if B_pad != B:
        x = jnp.pad(x, ((0, B_pad - B), (0, 0)))

    grid = (B_pad // TB,)

    def resident(shape):
        # Whole array, same block every grid step -> DMA'd once, VMEM-resident.
        # (pl.Buffered(1) would shave a spare buffer, but the weights are only
        #  ~0.1 MiB total in bf16 so the default double-buffer is fine.)
        return pl.BlockSpec(shape, lambda i, _s=shape: (0,) * len(_s))

    flops = 2 * B_pad * (K * H1 + H1 * 128 + 128 * 128 + 128 * N)
    bytes_accessed = (
        4 * B_pad * K + 4 * B_pad * N                          # x stream + out
        + 2 * (K * H1 + H1 * 128 + 128 * 128 + 128 * N)        # bf16 weights
        + 4 * (H1 + N))                                        # f32 biases

    out = pl.pallas_call(
        simplenet_kernel,
        out_shape=jax.ShapeDtypeStruct((B_pad, N), x.dtype),
        grid=grid,
        in_specs=[
            pl.BlockSpec((TB, K), lambda i: (i, 0)),   # streamed activations
            resident(w1.shape),
            resident(b1.shape),
            resident(w2.shape),
            resident(w3.shape),
            resident(w4.shape),
            resident(b4.shape),
        ],
        out_specs=pl.BlockSpec((TB, N), lambda i: (i, 0)),
        compiler_params=pltpu.CompilerParams(
            dimension_semantics=("parallel",),
            vmem_limit_bytes=32 * 1024 * 1024,   # safe on v7x (64 MiB/TC) too
        ),
        cost_estimate=pl.CostEstimate(
            flops=flops, transcendentals=0, bytes_accessed=bytes_accessed),
    )(x, w1, b1, w2, w3, w4, b4)

    return out[:B] if B_pad != B else out


def init_params(key, dim_input, dim_output, dtype=jnp.float32):
    """PyTorch-style (uniform +-1/sqrt(fan_in)) init, weights pre-transposed
    to (in, out). Returns *unprepared* f32 params (used by the reference)."""
    ks = jax.random.split(key, 6)

    def uinit(k, shape, fan_in):
        bound = 1.0 / jnp.sqrt(jnp.array(fan_in, dtype=jnp.float32))
        return jax.random.uniform(k, shape, dtype, -bound, bound)

    w1 = uinit(ks[0], (dim_input, 64), dim_input)
    b1 = uinit(ks[1], (64,), dim_input)
    w2 = uinit(ks[2], (64, 128), 64)
    w3 = uinit(ks[3], (128, 128), 128)
    w4 = uinit(ks[4], (128, dim_output), 128)
    b4 = uinit(ks[5], (dim_output,), 128)
    return (w1, b1, w2, w3, w4, b4)


def prepare_params(params, compute_dtype=jnp.bfloat16):
    """Zero-pad the 64-wide hidden to 128 lanes (mathematical no-op), cast
    weights to bf16 for single-pass MXU, keep biases in f32 (added after the
    f32-accumulated matmul)."""
    w1, b1, w2, w3, w4, b4 = params
    h1_pad = _round_up(w1.shape[1], LANE)                      # 64 -> 128
    w1p = jnp.pad(w1, ((0, 0), (0, h1_pad - w1.shape[1]))).astype(compute_dtype)
    b1p = jnp.pad(b1, (0, h1_pad - b1.shape[0])).reshape(1, h1_pad)
    b1p = b1p.astype(jnp.float32)
    w2p = jnp.pad(w2, ((0, h1_pad - w2.shape[0]), (0, 0))).astype(compute_dtype)
    w3p = w3.astype(compute_dtype)
    w4p = w4.astype(compute_dtype)
    b4p = b4.reshape(1, -1).astype(jnp.float32)
    return (w1p, b1p, w2p, w3p, w4p, b4p)


def reference_forward(x, params):
    """Pure-JAX f32 reference matching the PyTorch forward (raw params)."""
    w1, b1, w2, w3, w4, b4 = params
    h = jnp.maximum(x @ w1 + b1, 0.0)
    h = jnp.maximum(h @ w2, 0.0)
    h = jnp.maximum(h @ w3, 0.0)
    h = h.reshape(-1, 128)
    return h @ w4 + b4


if __name__ == "__main__":
    dim_input, dim_output = 32, 16

    key = jax.random.PRNGKey(0)
    kx, kx2, kp = jax.random.split(key, 3)

    raw_params = init_params(kp, dim_input, dim_output)
    prepared = prepare_params(raw_params)

    # Small batch (single tile).
    x = jax.random.normal(kx, (8, dim_input), dtype=jnp.float32)
    out = jax.block_until_ready(simplenet_forward(x, prepared))
    ref = reference_forward(x, raw_params)
    assert out.shape == (8, dim_output)
    assert jnp.allclose(out, ref, atol=5e-2, rtol=5e-2), "mismatch (small batch)"

    # Larger non-aligned batch (multi-tile path; padded rows sliced off).
    x2 = jax.random.normal(kx2, (1030, dim_input), dtype=jnp.float32)
    out2 = jax.block_until_ready(simplenet_forward(x2, prepared))
    ref2 = reference_forward(x2, raw_params)
    assert out2.shape == (1030, dim_output)
    assert jnp.allclose(out2, ref2, atol=5e-2, rtol=5e-2), "mismatch (large batch)"

    print("KERNEL_OK")
</pallas_src>

<mosaic_0001>
module attributes {stable_mosaic.version = 11 : i64} {
  func.func @simplenet_kernel(%arg0: i32, %arg1: memref<8x32xf32, #tpu.memory_space<vmem>>, %arg2: memref<32x128xbf16, #tpu.memory_space<vmem>>, %arg3: memref<1x128xf32, #tpu.memory_space<vmem>>, %arg4: memref<128x128xbf16, #tpu.memory_space<vmem>>, %arg5: memref<128x128xbf16, #tpu.memory_space<vmem>>, %arg6: memref<128x16xbf16, #tpu.memory_space<vmem>>, %arg7: memref<1x16xf32, #tpu.memory_space<vmem>>, %arg8: memref<8x16xf32, #tpu.memory_space<vmem>>) attributes {dimension_semantics = [#tpu.dimension_semantics<parallel>], iteration_bounds = array<i64: 1>, scalar_prefetch = 0 : i64, scratch_operands = 0 : i64, tpu.core_type = #tpu.core_type<tc>, window_params = [{transform_indices = @transform_0, window_bounds = array<i64: 8, 32>}, {pipeline_mode = #tpu.pipeline_mode<synchronous>, transform_indices = @transform_1, window_bounds = array<i64: 32, 128>}, {pipeline_mode = #tpu.pipeline_mode<synchronous>, transform_indices = @transform_2, window_bounds = array<i64: 1, 128>}, {pipeline_mode = #tpu.pipeline_mode<synchronous>, transform_indices = @transform_3, window_bounds = array<i64: 128, 128>}, {pipeline_mode = #tpu.pipeline_mode<synchronous>, transform_indices = @transform_4, window_bounds = array<i64: 128, 128>}, {pipeline_mode = #tpu.pipeline_mode<synchronous>, transform_indices = @transform_5, window_bounds = array<i64: 128, 16>}, {pipeline_mode = #tpu.pipeline_mode<synchronous>, transform_indices = @transform_6, window_bounds = array<i64: 1, 16>}, {transform_indices = @transform_7, window_bounds = array<i64: 8, 16>}]} {
    %c0 = arith.constant 0 : index
    %c0_0 = arith.constant 0 : index
    %0 = vector.load %arg1[%c0, %c0_0] : memref<8x32xf32, #tpu.memory_space<vmem>>, vector<8x32xf32>
    %1 = arith.truncf %0 : vector<8x32xf32> to vector<8x32xbf16>
    %c0_1 = arith.constant 0 : index
    %c0_2 = arith.constant 0 : index
    %2 = vector.load %arg2[%c0_1, %c0_2] : memref<32x128xbf16, #tpu.memory_space<vmem>>, vector<32x128xbf16>
    %cst = arith.constant dense<0.000000e+00> : vector<8x128xf32>
    %3 = tpu.matmul %1, %2, %cst {dimension_numbers = #tpu.dot_dimension_numbers<[1], [0], [0], [1], [0, 0, 1, 1], [], []>} : vector<8x32xbf16>, vector<32x128xbf16>, vector<8x128xf32> -> vector<8x128xf32>
    %c0_3 = arith.constant 0 : index
    %c0_4 = arith.constant 0 : index
    %4 = vector.load %arg3[%c0_3, %c0_4] : memref<1x128xf32, #tpu.memory_space<vmem>>, vector<1x128xf32>
    %5 = vector.broadcast %4 : vector<1x128xf32> to vector<8x128xf32>
    %6 = arith.addf %3, %5 : vector<8x128xf32>
    %cst_5 = arith.constant 0.000000e+00 : f32
    %7 = vector.broadcast %cst_5 : f32 to vector<8x128xf32>
    %8 = arith.maximumf %6, %7 : vector<8x128xf32>
    %9 = arith.truncf %8 : vector<8x128xf32> to vector<8x128xbf16>
    %c0_6 = arith.constant 0 : index
    %c0_7 = arith.constant 0 : index
    %10 = vector.load %arg4[%c0_6, %c0_7] : memref<128x128xbf16, #tpu.memory_space<vmem>>, vector<128x128xbf16>
    %cst_8 = arith.constant dense<0.000000e+00> : vector<8x128xf32>
    %11 = tpu.matmul %9, %10, %cst_8 {dimension_numbers = #tpu.dot_dimension_numbers<[1], [0], [0], [1], [0, 0, 1, 1], [], []>} : vector<8x128xbf16>, vector<128x128xbf16>, vector<8x128xf32> -> vector<8x128xf32>
    %cst_9 = arith.constant 0.000000e+00 : f32
    %12 = vector.broadcast %cst_9 : f32 to vector<8x128xf32>
    %13 = arith.maximumf %11, %12 : vector<8x128xf32>
    %14 = arith.truncf %13 : vector<8x128xf32> to vector<8x128xbf16>
    %c0_10 = arith.constant 0 : index
    %c0_11 = arith.constant 0 : index
    %15 = vector.load %arg5[%c0_10, %c0_11] : memref<128x128xbf16, #tpu.memory_space<vmem>>, vector<128x128xbf16>
    %cst_12 = arith.constant dense<0.000000e+00> : vector<8x128xf32>
    %16 = tpu.matmul %14, %15, %cst_12 {dimension_numbers = #tpu.dot_dimension_numbers<[1], [0], [0], [1], [0, 0, 1, 1], [], []>} : vector<8x128xbf16>, vector<128x128xbf16>, vector<8x128xf32> -> vector<8x128xf32>
    %cst_13 = arith.constant 0.000000e+00 : f32
    %17 = vector.broadcast %cst_13 : f32 to vector<8x128xf32>
    %18 = arith.maximumf %16, %17 : vector<8x128xf32>
    %19 = arith.truncf %18 : vector<8x128xf32> to vector<8x128xbf16>
    %c0_14 = arith.constant 0 : index
    %c0_15 = arith.constant 0 : index
    %20 = vector.load %arg6[%c0_14, %c0_15] : memref<128x16xbf16, #tpu.memory_space<vmem>>, vector<128x16xbf16>
    %cst_16 = arith.constant dense<0.000000e+00> : vector<8x16xf32>
    %21 = tpu.matmul %19, %20, %cst_16 {dimension_numbers = #tpu.dot_dimension_numbers<[1], [0], [0], [1], [0, 0, 1, 1], [], []>} : vector<8x128xbf16>, vector<128x16xbf16>, vector<8x16xf32> -> vector<8x16xf32>
    %c0_17 = arith.constant 0 : index
    %c0_18 = arith.constant 0 : index
    %22 = vector.load %arg7[%c0_17, %c0_18] : memref<1x16xf32, #tpu.memory_space<vmem>>, vector<1x16xf32>
    %23 = vector.broadcast %22 : vector<1x16xf32> to vector<8x16xf32>
    %24 = arith.addf %21, %23 : vector<8x16xf32>
    %c0_19 = arith.constant 0 : index
    %c0_20 = arith.constant 0 : index
    %25 = vector.load %arg8[%c0_19, %c0_20] : memref<8x16xf32, #tpu.memory_space<vmem>>, vector<8x16xf32>
    tpu.vector_store %arg8[%c0_19, %c0_20], %24 {strides = array<i32>} : memref<8x16xf32, #tpu.memory_space<vmem>>, vector<8x16xf32>,
    return
  }
  func.func @transform_0(%arg0: i32) -> (i32, i32) {
    %c0_i32 = arith.constant 0 : i32
    %c0_i32_0 = arith.constant 0 : i32
    return %arg0, %c0_i32 : i32, i32
  }
  func.func @transform_1(%arg0: i32) -> (i32, i32) {
    %c0_i32 = arith.constant 0 : i32
    %c0_i32_0 = arith.constant 0 : i32
    %c0_i32_1 = arith.constant 0 : i32
    return %c0_i32, %c0_i32_0 : i32, i32
  }
  func.func @transform_2(%arg0: i32) -> (i32, i32) {
    %c0_i32 = arith.constant 0 : i32
    %c0_i32_0 = arith.constant 0 : i32
    %c0_i32_1 = arith.constant 0 : i32
    return %c0_i32, %c0_i32_0 : i32, i32
  }
  func.func @transform_3(%arg0: i32) -> (i32, i32) {
    %c0_i32 = arith.constant 0 : i32
    %c0_i32_0 = arith.constant 0 : i32
    %c0_i32_1 = arith.constant 0 : i32
    return %c0_i32, %c0_i32_0 : i32, i32
  }
  func.func @transform_4(%arg0: i32) -> (i32, i32) {
    %c0_i32 = arith.constant 0 : i32
    %c0_i32_0 = arith.constant 0 : i32
    %c0_i32_1 = arith.constant 0 : i32
    return %c0_i32, %c0_i32_0 : i32, i32
  }
  func.func @transform_5(%arg0: i32) -> (i32, i32) {
    %c0_i32 = arith.constant 0 : i32
    %c0_i32_0 = arith.constant 0 : i32
    %c0_i32_1 = arith.constant 0 : i32
    return %c0_i32, %c0_i32_0 : i32, i32
  }
  func.func @transform_6(%arg0: i32) -> (i32, i32) {
    %c0_i32 = arith.constant 0 : i32
    %c0_i32_0 = arith.constant 0 : i32
    %c0_i32_1 = arith.constant 0 : i32
    return %c0_i32, %c0_i32_0 : i32, i32
  }
  func.func @transform_7(%arg0: i32) -> (i32, i32) {
    %c0_i32 = arith.constant 0 : i32
    %c0_i32_0 = arith.constant 0 : i32
    return %arg0, %c0_i32 : i32, i32
  }
}

</mosaic_0001>

<llo_original>
// kernel: simplenet_forward.1
$region0: #{simplenet_forward.1}
  #allocation0 [shape = 'u32[]', space=smem, size = 0x4, offset = 0x4, fixed_abs, tag = 'smem constant byte address 0x4 - core index']
  #allocation1 [shape = 'u32[72,128]{1,0:T(1,128)}', space=vmem, size = 0x9000, scoped, tag = 'internal scratch']
  %s0 = inlined_call_operand.vmem [shape: f32[8,32], index: 0, kind: input, shape index: {}]
  %s1 = inlined_call_operand.hbm [shape: bf16[32,128], index: 1, kind: input, shape index: {}]
  %s2 = inlined_call_operand.vmem [shape: f32[1,128], index: 2, kind: input, shape index: {}]
  %s3 = inlined_call_operand.vmem [shape: bf16[128,128], index: 3, kind: input, shape index: {}]
  %s4 = inlined_call_operand.hbm [shape: bf16[128,128], index: 4, kind: input, shape index: {}]
  %s5 = inlined_call_operand.vmem [shape: bf16[128,16], index: 5, kind: input, shape index: {}]
  %s6 = inlined_call_operand.vmem [shape: f32[1,16], index: 6, kind: input, shape index: {}]
  %s7 = inlined_call_operand.hbm [shape: f32[8,16], index: 7, kind: output, shape index: {}]
  %s8 = sld [smem:[#allocation0]]
  $region46: #{simplenet_forward.1} parent=0
    _
  %s10 = ssub.s32 1, %s8
  %s11 = scalar_select 0, %s10, %s8
  $region1: #{simplenet_forward.1} parent=0
    #allocation2 [shape = 'u8[8192]{0}', space=vmem, size = 0x2000, scoped, tag = 'input window, operand 1, single buffered']
    #allocation3 [shape = 's32[1]{0}', space=sflag, size = 0x4, scoped, tag = 'scoped memory for simplenet_forward.1']
    #allocation4 [shape = 's32[1]{0}', space=sflag, size = 0x4, scoped, tag = 'scoped memory for simplenet_forward.1']
    #allocation5 [shape = 'u8[32768]{0}', space=vmem, size = 0x8000, scoped, tag = 'input window, operand 4, single buffered']
    #allocation6 [shape = 's32[1]{0}', space=sflag, size = 0x4, scoped, tag = 'scoped memory for simplenet_forward.1']
    #allocation7 [shape = 'u8[4096]{0}', space=vmem, size = 0x1000, scoped, tag = 'output window, operand 0, single buffered']
    %12 = vsyncpa [#allocation3], 0
    %13 = vsyncpa [#allocation6], 0
    %14 = vsyncpa [#allocation4], 0
    // Predicated region
    $region2: #{simplenet_forward.1} parent=1 // pred_check
      _
    $region3: #{simplenet_forward.1} parent=1 // pred_check_branch
      %16 = sbr.rel (0) target = $region5
    $region4: #{simplenet_forward.1} parent=1 // pred_region
      _
    $region5: #{simplenet_forward.1} parent=1 // pred_fallthru
      _
    // Predicated region
    $region6: #{simplenet_forward.1} parent=1 // pred_check
      _
    $region7: #{simplenet_forward.1} parent=1 // pred_check_branch
      %18 = sbr.rel (0) target = $region9
    $region8: #{simplenet_forward.1} parent=1 // pred_region
      %20 = vsyncadd [#allocation3], 0
      %s21 = sshll.u32 %s1, 4
      %s22 = int_to_ptr.hbm [resolvable:$true] %s21
      %s23 = sshll.u32 [#allocation2], 4
      %s24 = int_to_ptr.vmem [resolvable:$true] %s23
      %29 = dma.hbm_to_vmem [thread:$0]  %s22, 256, %s24, [#allocation3], 64, 64, 4
    $region9: #{simplenet_forward.1} parent=1 // pred_fallthru
      _
    // Predicated region
    $region10: #{simplenet_forward.1} parent=1 // pred_check
      _
    $region11: #{simplenet_forward.1} parent=1 // pred_check_branch
      %31 = sbr.rel (0) target = $region13
    $region12: #{simplenet_forward.1} parent=1 // pred_region
      _
    $region13: #{simplenet_forward.1} parent=1 // pred_fallthru
      _
    // Predicated region
    $region14: #{simplenet_forward.1} parent=1 // pred_check
      _
    $region15: #{simplenet_forward.1} parent=1 // pred_check_branch
      %33 = sbr.rel (0) target = $region17
    $region16: #{simplenet_forward.1} parent=1 // pred_region
      _
    $region17: #{simplenet_forward.1} parent=1 // pred_fallthru
      _
    // Predicated region
    $region18: #{simplenet_forward.1} parent=1 // pred_check
      _
    $region19: #{simplenet_forward.1} parent=1 // pred_check_branch
      %35 = sbr.rel (0) target = $region21
    $region20: #{simplenet_forward.1} parent=1 // pred_region
      %37 = vsyncadd [#allocation6], 0
      %s38 = sshll.u32 %s4, 4
      %s39 = int_to_ptr.hbm [resolvable:$true] %s38
      %s40 = sshll.u32 [#allocation5], 4
      %s41 = int_to_ptr.vmem [resolvable:$true] %s40
      %46 = dma.hbm_to_vmem [thread:$0]  %s39, 1024, %s41, [#allocation6], 64, 64, 4
    $region21: #{simplenet_forward.1} parent=1 // pred_fallthru
      _
    // Predicated region
    $region22: #{simplenet_forward.1} parent=1 // pred_check
      _
    $region23: #{simplenet_forward.1} parent=1 // pred_check_branch
      %48 = sbr.rel (0) target = $region25
    $region24: #{simplenet_forward.1} parent=1 // pred_region
      _
    $region25: #{simplenet_forward.1} parent=1 // pred_fallthru
      _
    // Predicated region
    $region26: #{simplenet_forward.1} parent=1 // pred_check
      _
    $region27: #{simplenet_forward.1} parent=1 // pred_check_branch
      %50 = sbr.rel (0) target = $region29
    $region28: #{simplenet_forward.1} parent=1 // pred_region
      _
    $region29: #{simplenet_forward.1} parent=1 // pred_fallthru
      _
    // Predicated region
    $region30: #{simplenet_forward.1} parent=1 // pred_check
      _
    $region31: #{simplenet_forward.1} parent=1 // pred_check_branch
      %52 = sbr.rel (0) target = $region33
    $region32: #{simplenet_forward.1} parent=1 // pred_region
      %54 = dma.done [#allocation3], 256
    $region33: #{simplenet_forward.1} parent=1 // pred_fallthru
      _
    // Predicated region
    $region34: #{simplenet_forward.1} parent=1 // pred_check
      _
    $region35: #{simplenet_forward.1} parent=1 // pred_check_branch
      %56 = sbr.rel (0) target = $region37
    $region36: #{simplenet_forward.1} parent=1 // pred_region
      %58 = dma.done [#allocation6], 1024
    $region37: #{simplenet_forward.1} parent=1 // pred_fallthru
      _
    %v60 = vld [vmem:[%s0] sm:$0xff]
    %v61 = vpack.c.bf16 %v60, %v60
    %v62 = vld [vmem:[#allocation2] sm:$0xf]
    %v63 = vld [vmem:[#allocation2 + $0x4] sm:$0xf]
    %v64 = vld [vmem:[#allocation2 + $0x8] sm:$0xf]
    %v65 = vld [vmem:[#allocation2 + $0xc] sm:$0xf]
    %v66 = vld [vmem:[%s2] sm:$0x1]
    %v68 = vperm.slane %v66, 0
    %v74 = vunpack.c.l.b16 %v62
    %v75 = vunpack.c.l.b16 %v63
    %v76 = vunpack.c.l.b16 %v64
    %v77 = vunpack.c.l.b16 %v65
    %v78 = vpack.c.b16 %v75, %v74
    %v79 = vpack.c.b16 %v77, %v76
    %vm82 = vcmask 261120
    %v84 = vsel %vm82, %v61, 0
    %86 = vmatpush.bf16.msra.mxu0 0
    %87 = vmatpush.bf16.msra.mxu0 0
    %88 = vmatpush.bf16.msra.mxu0 0
    %89 = vmatpush.bf16.msra.mxu0 0
    %90 = vmatpush.bf16.msra.mxu0 0
    %91 = vmatpush.bf16.msra.mxu0 0
    %92 = vmatpush.bf16.msra.mxu0 %v79
    %93 = vmatpush.bf16.msra.mxu0 %v78
    %94 = vmatmul.bf16.gmra.mxu0 %v84
    %v95 = vpop.f32.mrf.mxu0
    %v96 = vadd.f32 %v68, %v95
    %v97 = vpop.f32.mrf.mxu0
    %98 = vdwg.mxu0
    %v99 = vmax.f32 %v96, 0.0
    %v100 = vpack.c.bf16 %v99, %v99
    %v101 = vld [vmem:[%s3] sm:$0xf]
    %v102 = vld [vmem:[%s3 + $0x4] sm:$0xf]
    %v103 = vld [vmem:[%s3 + $0x8] sm:$0xf]
    %v104 = vld [vmem:[%s3 + $0xc] sm:$0xf]
    %v105 = vld [vmem:[%s3 + $0x10] sm:$0xf]
    %v106 = vld [vmem:[%s3 + $0x14] sm:$0xf]
    %v107 = vld [vmem:[%s3 + $0x18] sm:$0xf]
    %v108 = vld [vmem:[%s3 + $0x1c] sm:$0xf]
    %v109 = vld [vmem:[%s3 + $0x20] sm:$0xf]
    %v110 = vld [vmem:[%s3 + $0x24] sm:$0xf]
    %v111 = vld [vmem:[%s3 + $0x28] sm:$0xf]
    %v112 = vld [vmem:[%s3 + $0x2c] sm:$0xf]
    %v113 = vld [vmem:[%s3 + $0x30] sm:$0xf]
    %v114 = vld [vmem:[%s3 + $0x34] sm:$0xf]
    %v115 = vld [vmem:[%s3 + $0x38] sm:$0xf]
    %v116 = vld [vmem:[%s3 + $0x3c] sm:$0xf]
    %v133 = vunpack.c.l.b16 %v101
    %v134 = vunpack.c.l.b16 %v102
    %v135 = vunpack.c.l.b16 %v103
    %v136 = vunpack.c.l.b16 %v104
    %v137 = vunpack.c.l.b16 %v105
    %v138 = vunpack.c.l.b16 %v106
    %v139 = vunpack.c.l.b16 %v107
    %v140 = vunpack.c.l.b16 %v108
    %v141 = vunpack.c.l.b16 %v109
    %v142 = vunpack.c.l.b16 %v110
    %v143 = vunpack.c.l.b16 %v111
    %v144 = vunpack.c.l.b16 %v112
    %v145 = vunpack.c.l.b16 %v113
    %v146 = vunpack.c.l.b16 %v114
    %v147 = vunpack.c.l.b16 %v115
    %v148 = vunpack.c.l.b16 %v116
    %v149 = vpack.c.b16 %v134, %v133
    %v150 = vpack.c.b16 %v136, %v135
    %v151 = vpack.c.b16 %v138, %v137
    %v152 = vpack.c.b16 %v140, %v139
    %v153 = vpack.c.b16 %v142, %v141
    %v154 = vpack.c.b16 %v144, %v143
    %v155 = vpack.c.b16 %v146, %v145
    %v156 = vpack.c.b16 %v148, %v147
    %165 = vmatpush.bf16.msra.mxu0 %v156
    %166 = vmatpush.bf16.msra.mxu0 %v155
    %167 = vmatpush.bf16.msra.mxu0 %v154
    %168 = vmatpush.bf16.msra.mxu0 %v153
    %169 = vmatpush.bf16.msra.mxu0 %v152
    %170 = vmatpush.bf16.msra.mxu0 %v151
    %171 = vmatpush.bf16.msra.mxu0 %v150
    %172 = vmatpush.bf16.msra.mxu0 %v149
    %173 = vmatmul.bf16.gmra.mxu0 %v100
    %v174 = vpop.f32.mrf.mxu0
    %v175 = vadd.f32 0.0, %v174
    %v176 = vpop.f32.mrf.mxu0
    %177 = vdwg.mxu0
    %v178 = vmax.f32 %v175, 0.0
    %v179 = vpack.c.bf16 %v178, %v178
    %v180 = vld [vmem:[#allocation5] sm:$0xf]
    %v181 = vld [vmem:[#allocation5 + $0x4] sm:$0xf]
    %v182 = vld [vmem:[#allocation5 + $0x8] sm:$0xf]
    %v183 = vld [vmem:[#allocation5 + $0xc] sm:$0xf]
    %v184 = vld [vmem:[#allocation5 + $0x10] sm:$0xf]
    %v185 = vld [vmem:[#allocation5 + $0x14] sm:$0xf]
    %v186 = vld [vmem:[#allocation5 + $0x18] sm:$0xf]
    %v187 = vld [vmem:[#allocation5 + $0x1c] sm:$0xf]
    %v188 = vld [vmem:[#allocation5 + $0x20] sm:$0xf]
    %v189 = vld [vmem:[#allocation5 + $0x24] sm:$0xf]
    %v190 = vld [vmem:[#allocation5 + $0x28] sm:$0xf]
    %v191 = vld [vmem:[#allocation5 + $0x2c] sm:$0xf]
    %v192 = vld [vmem:[#allocation5 + $0x30] sm:$0xf]
    %v193 = vld [vmem:[#allocation5 + $0x34] sm:$0xf]
    %v194 = vld [vmem:[#allocation5 + $0x38] sm:$0xf]
    %v195 = vld [vmem:[#allocation5 + $0x3c] sm:$0xf]
    %v212 = vunpack.c.l.b16 %v180
    %v213 = vunpack.c.l.b16 %v181
    %v214 = vunpack.c.l.b16 %v182
    %v215 = vunpack.c.l.b16 %v183
    %v216 = vunpack.c.l.b16 %v184
    %v217 = vunpack.c.l.b16 %v185
    %v218 = vunpack.c.l.b16 %v186
    %v219 = vunpack.c.l.b16 %v187
    %v220 = vunpack.c.l.b16 %v188
    %v221 = vunpack.c.l.b16 %v189
    %v222 = vunpack.c.l.b16 %v190
    %v223 = vunpack.c.l.b16 %v191
    %v224 = vunpack.c.l.b16 %v192
    %v225 = vunpack.c.l.b16 %v193
    %v226 = vunpack.c.l.b16 %v194
    %v227 = vunpack.c.l.b16 %v195
    %v228 = vpack.c.b16 %v213, %v212
    %v229 = vpack.c.b16 %v215, %v214
    %v230 = vpack.c.b16 %v217, %v216
    %v231 = vpack.c.b16 %v219, %v218
    %v232 = vpack.c.b16 %v221, %v220
    %v233 = vpack.c.b16 %v223, %v222
    %v234 = vpack.c.b16 %v225, %v224
    %v235 = vpack.c.b16 %v227, %v226
    %244 = vmatpush.bf16.msra.mxu0 %v235
    %245 = vmatpush.bf16.msra.mxu0 %v234
    %246 = vmatpush.bf16.msra.mxu0 %v233
    %247 = vmatpush.bf16.msra.mxu0 %v232
    %248 = vmatpush.bf16.msra.mxu0 %v231
    %249 = vmatpush.bf16.msra.mxu0 %v230
    %250 = vmatpush.bf16.msra.mxu0 %v229
    %251 = vmatpush.bf16.msra.mxu0 %v228
    %252 = vmatmul.bf16.gmra.mxu0 %v179
    %v253 = vpop.f32.mrf.mxu0
    %v254 = vadd.f32 0.0, %v253
    %v255 = vpop.f32.mrf.mxu0
    %256 = vdwg.mxu0
    %v257 = vmax.f32 %v254, 0.0
    %v258 = vpack.c.bf16 %v257, %v257
    %v259 = vld [vmem:[%s5] sm:$0xf]
    %v260 = vld [vmem:[%s5 + $0x4] sm:$0xf]
    %v261 = vld [vmem:[%s5 + $0x8] sm:$0xf]
    %v262 = vld [vmem:[%s5 + $0xc] sm:$0xf]
    %v263 = vld [vmem:[%s5 + $0x10] sm:$0xf]
    %v264 = vld [vmem:[%s5 + $0x14] sm:$0xf]
    %v265 = vld [vmem:[%s5 + $0x18] sm:$0xf]
    %v266 = vld [vmem:[%s5 + $0x1c] sm:$0xf]
    %v267 = vld [vmem:[%s5 + $0x20] sm:$0xf]
    %v268 = vld [vmem:[%s5 + $0x24] sm:$0xf]
    %v269 = vld [vmem:[%s5 + $0x28] sm:$0xf]
    %v270 = vld [vmem:[%s5 + $0x2c] sm:$0xf]
    %v271 = vld [vmem:[%s5 + $0x30] sm:$0xf]
    %v272 = vld [vmem:[%s5 + $0x34] sm:$0xf]
    %v273 = vld [vmem:[%s5 + $0x38] sm:$0xf]
    %v274 = vld [vmem:[%s5 + $0x3c] sm:$0xf]
    %v275 = vld [vmem:[%s6] sm:$0x1]
    %v277 = vperm.slane %v275, 0
    %v295 = vunpack.c.l.b16 %v259
    %v296 = vunpack.c.l.b16 %v260
    %v297 = vunpack.c.l.b16 %v261
    %v298 = vunpack.c.l.b16 %v262
    %v299 = vunpack.c.l.b16 %v263
    %v300 = vunpack.c.l.b16 %v264
    %v301 = vunpack.c.l.b16 %v265
    %v302 = vunpack.c.l.b16 %v266
    %v303 = vunpack.c.l.b16 %v267
    %v304 = vunpack.c.l.b16 %v268
    %v305 = vunpack.c.l.b16 %v269
    %v306 = vunpack.c.l.b16 %v270
    %v307 = vunpack.c.l.b16 %v271
    %v308 = vunpack.c.l.b16 %v272
    %v309 = vunpack.c.l.b16 %v273
    %v310 = vunpack.c.l.b16 %v274
    %v311 = vpack.c.b16 %v296, %v295
    %v312 = vpack.c.b16 %v298, %v297
    %v313 = vpack.c.b16 %v300, %v299
    %v314 = vpack.c.b16 %v302, %v301
    %v315 = vpack.c.b16 %v304, %v303
    %v316 = vpack.c.b16 %v306, %v305
    %v317 = vpack.c.b16 %v308, %v307
    %v318 = vpack.c.b16 %v310, %v309
    %327 = vmatpush.bf16.msra.mxu0 %v318
    %328 = vmatpush.bf16.msra.mxu0 %v317
    %329 = vmatpush.bf16.msra.mxu0 %v316
    %330 = vmatpush.bf16.msra.mxu0 %v315
    %331 = vmatpush.bf16.msra.mxu0 %v314
    %332 = vmatpush.bf16.msra.mxu0 %v313
    %333 = vmatpush.bf16.msra.mxu0 %v312
    %334 = vmatpush.bf16.msra.mxu0 %v311
    %335 = vmatmul.bf16.gmra.mxu0 %v258
    %v336 = vpop.f32.mrf.mxu0
    %v337 = vadd.f32 %v277, %v336
    %v338 = vpop.f32.mrf.mxu0
    %339 = vdwg.mxu0
    %vm340 = vcmask 130048
    %341 = vst.msk [vmem:[#allocation7] sm:$0xff] %vm340, %v337
    // Predicated region
    $region38: #{simplenet_forward.1} parent=1 // pred_check
      _
    $region39: #{simplenet_forward.1} parent=1 // pred_check_branch
      %343 = sbr.rel (0) target = $region41
    $region40: #{simplenet_forward.1} parent=1 // pred_region
      %345 = vsyncadd [#allocation4], 0
      %s347 = sshll.u32 [#allocation7], 4
      %s348 = int_to_ptr.vmem [resolvable:$true] %s347
      %s349 = sshll.u32 %s7, 4
      %s350 = int_to_ptr.hbm [resolvable:$true] %s349
      %352 = dma.vmem_to_hbm [thread:$0]  %s348, 128, %s350, [#allocation4]
    $region41: #{simplenet_forward.1} parent=1 // pred_fallthru
      _
    // Predicated region
    $region42: #{simplenet_forward.1} parent=1 // pred_check
      _
    $region43: #{simplenet_forward.1} parent=1 // pred_check_branch
      %354 = sbr.rel (0) target = $region45
    $region44: #{simplenet_forward.1} parent=1 // pred_region
      %356 = dma.done [#allocation4], 128
    $region45: #{simplenet_forward.1} parent=1 // pred_fallthru
      _
    %357 = vsyncpa [#allocation3], 1
    %358 = vsyncpa [#allocation6], 1
    %359 = vsyncpa [#allocation4], 1

</llo_original>
